<compile_context>
chip_gen: v6e
topology: v6e:2x2x1
jax: 0.10.0
libtpu: 0.0.40
codegen_flags: <defaults>
</compile_context>

<pallas_src>
import jax
import jax.numpy as jnp
from jax.experimental import pallas as pl
from jax.experimental.pallas import tpu as pltpu

_LANE = 128


def _mlp_kernel(x_ref, w1_ref, b1_ref, w2_ref, b2_ref,
                w3_ref, b3_ref, w4_ref, b4_ref, o_ref):
    # x_ref: (TB, D_in) bf16; w*: (in, out) bf16; b*: (1, out) f32;
    # o_ref: (TB, 128) f32 (lane-dense, padded output).
    h = jnp.dot(x_ref[...], w1_ref[...],
                preferred_element_type=jnp.float32) + b1_ref[...]
    h = jnp.maximum(h, 0.0).astype(w2_ref.dtype)
    h = jnp.dot(h, w2_ref[...],
                preferred_element_type=jnp.float32) + b2_ref[...]
    h = jnp.maximum(h, 0.0).astype(w3_ref.dtype)
    h = jnp.dot(h, w3_ref[...],
                preferred_element_type=jnp.float32) + b3_ref[...]
    h = jnp.maximum(h, 0.0).astype(w4_ref.dtype)
    y = jnp.dot(h, w4_ref[...],
                preferred_element_type=jnp.float32) + b4_ref[...]
    o_ref[...] = y.astype(o_ref.dtype)


def prepare_mlp_params(params, compute_dtype=jnp.bfloat16):
    """One-time param prep (hoisted out of the forward call):
      * weights (out,in) -> (in,out) so every layer's output is lane-dense,
      * biases -> (1,out) rows that broadcast over the batch tile (kept f32),
      * final layer zero-padded 10 -> 128 output lanes (unmasked stores),
      * weights cast to the MXU compute dtype (bf16 by default)."""
    def wt(w):
        return jnp.asarray(w).T.astype(compute_dtype)

    w1, w2, w3, w4 = (wt(params["w1"]), wt(params["w2"]),
                      wt(params["w3"]), wt(params["w4"]))
    b1 = jnp.asarray(params["b1"], jnp.float32).reshape(1, -1)
    b2 = jnp.asarray(params["b2"], jnp.float32).reshape(1, -1)
    b3 = jnp.asarray(params["b3"], jnp.float32).reshape(1, -1)
    b4 = jnp.asarray(params["b4"], jnp.float32).reshape(1, -1)

    d_out = w4.shape[1]
    pad = (-d_out) % _LANE
    if pad:
        w4 = jnp.pad(w4, ((0, 0), (0, pad)))   # zero columns are free on the MXU
        b4 = jnp.pad(b4, ((0, 0), (0, pad)))
    return dict(w1=w1, b1=b1, w2=w2, b2=b2, w3=w3, b3=b3, w4=w4, b4=b4,
                d_out=d_out, compute_dtype=compute_dtype)


def _round_up(x, m):
    return ((x + m - 1) // m) * m


def mlp_forward(x, prepped, *, block_b=512):
    """x: (B, D_in).  prepped: output of prepare_mlp_params."""
    B, D_in = x.shape
    cd = prepped["compute_dtype"]
    x = x.astype(cd)

    # Batch tile: multiple of 8 (sublane), large (default up to 512) to
    # amortize per-grid-step overhead, but capped so the grid has >= 2 steps
    # whenever B > 8 -> "parallel" semantics shards tiles across v7x's 2 TCs.
    tb = min(block_b, max(8, _round_up((B + 1) // 2, 8)))
    n_blocks = pl.cdiv(B, tb)
    padded_b = n_blocks * tb
    if padded_b != B:
        x = jnp.pad(x, ((0, padded_b - B), (0, 0)))

    w1, b1 = prepped["w1"], prepped["b1"]
    w2, b2 = prepped["w2"], prepped["b2"]
    w3, b3 = prepped["w3"], prepped["b3"]
    w4, b4 = prepped["w4"], prepped["b4"]
    d_pad = w4.shape[1]                      # 128: lane-dense output slab

    const = lambda i: (0, 0)                 # weights/biases resident in VMEM

    out = pl.pallas_call(
        _mlp_kernel,
        out_shape=jax.ShapeDtypeStruct((padded_b, d_pad), jnp.float32),
        grid=(n_blocks,),
        in_specs=[
            pl.BlockSpec((tb, D_in), lambda i: (i, 0)),   # x: tiled over batch
            pl.BlockSpec(w1.shape, const), pl.BlockSpec(b1.shape, const),
            pl.BlockSpec(w2.shape, const), pl.BlockSpec(b2.shape, const),
            pl.BlockSpec(w3.shape, const), pl.BlockSpec(b3.shape, const),
            pl.BlockSpec(w4.shape, const), pl.BlockSpec(b4.shape, const),
        ],
        out_specs=pl.BlockSpec((tb, d_pad), lambda i: (i, 0)),
        compiler_params=pltpu.CompilerParams(
            dimension_semantics=("parallel",),   # megacore-shard batch tiles
        ),
    )(x, w1, b1, w2, b2, w3, b3, w4, b4)

    # Strip batch padding and the lane padding of the final layer.
    return out[:B, :prepped["d_out"]]


if __name__ == "__main__":
    key = jax.random.PRNGKey(0)
    ks = jax.random.split(key, 9)

    # Small shapes consistent with the module: MLP(input_dim=32), batch of 64.
    input_dim = 32
    batch = 64
    layer_dims = [(input_dim, 512), (512, 256), (256, 128), (128, 10)]

    # Deterministic init mirroring torch.nn.Linear: U(-1/sqrt(in), 1/sqrt(in)).
    params = {}
    for li, (fan_in, fan_out) in enumerate(layer_dims, start=1):
        bound = 1.0 / jnp.sqrt(jnp.float32(fan_in))
        params[f"w{li}"] = jax.random.uniform(
            ks[2 * li - 2], (fan_out, fan_in), jnp.float32, -bound, bound)
        params[f"b{li}"] = jax.random.uniform(
            ks[2 * li - 1], (fan_out,), jnp.float32, -bound, bound)

    x = jax.random.normal(ks[8], (batch, input_dim), jnp.float32)

    prepped = prepare_mlp_params(params)        # one-time layout/dtype prep
    out = mlp_forward(x, prepped)
    out = jax.block_until_ready(out)

    # Pure-JAX f32 reference of the same forward pass.
    h = jnp.maximum(x @ params["w1"].T + params["b1"], 0.0)
    h = jnp.maximum(h @ params["w2"].T + params["b2"], 0.0)
    h = jnp.maximum(h @ params["w3"].T + params["b3"], 0.0)
    ref = h @ params["w4"].T + params["b4"]

    assert out.shape == (batch, 10)
    # bf16 operands with f32 accumulation: compare with a bf16-appropriate tolerance.
    assert jnp.allclose(out, ref, atol=5e-2, rtol=5e-2), (
        float(jnp.max(jnp.abs(out - ref))))

    print("KERNEL_OK")
</pallas_src>

<mosaic_0001>
module attributes {stable_mosaic.version = 11 : i64} {
  func.func @_mlp_kernel(%arg0: i32, %arg1: memref<32x32xbf16, #tpu.memory_space<vmem>>, %arg2: memref<32x512xbf16, #tpu.memory_space<vmem>>, %arg3: memref<1x512xf32, #tpu.memory_space<vmem>>, %arg4: memref<512x256xbf16, #tpu.memory_space<vmem>>, %arg5: memref<1x256xf32, #tpu.memory_space<vmem>>, %arg6: memref<256x128xbf16, #tpu.memory_space<vmem>>, %arg7: memref<1x128xf32, #tpu.memory_space<vmem>>, %arg8: memref<128x128xbf16, #tpu.memory_space<vmem>>, %arg9: memref<1x128xf32, #tpu.memory_space<vmem>>, %arg10: memref<32x128xf32, #tpu.memory_space<vmem>>) attributes {dimension_semantics = [#tpu.dimension_semantics<parallel>], iteration_bounds = array<i64: 2>, scalar_prefetch = 0 : i64, scratch_operands = 0 : i64, tpu.core_type = #tpu.core_type<tc>, window_params = [{transform_indices = @transform_0, window_bounds = array<i64: 32, 32>}, {pipeline_mode = #tpu.pipeline_mode<synchronous>, transform_indices = @transform_1, window_bounds = array<i64: 32, 512>}, {pipeline_mode = #tpu.pipeline_mode<synchronous>, transform_indices = @transform_2, window_bounds = array<i64: 1, 512>}, {pipeline_mode = #tpu.pipeline_mode<synchronous>, transform_indices = @transform_3, window_bounds = array<i64: 512, 256>}, {pipeline_mode = #tpu.pipeline_mode<synchronous>, transform_indices = @transform_4, window_bounds = array<i64: 1, 256>}, {pipeline_mode = #tpu.pipeline_mode<synchronous>, transform_indices = @transform_5, window_bounds = array<i64: 256, 128>}, {pipeline_mode = #tpu.pipeline_mode<synchronous>, transform_indices = @transform_6, window_bounds = array<i64: 1, 128>}, {pipeline_mode = #tpu.pipeline_mode<synchronous>, transform_indices = @transform_7, window_bounds = array<i64: 128, 128>}, {pipeline_mode = #tpu.pipeline_mode<synchronous>, transform_indices = @transform_8, window_bounds = array<i64: 1, 128>}, {transform_indices = @transform_9, window_bounds = array<i64: 32, 128>}]} {
    %c0 = arith.constant 0 : index
    %c0_0 = arith.constant 0 : index
    %0 = vector.load %arg1[%c0, %c0_0] : memref<32x32xbf16, #tpu.memory_space<vmem>>, vector<32x32xbf16>
    %c0_1 = arith.constant 0 : index
    %c0_2 = arith.constant 0 : index
    %1 = vector.load %arg2[%c0_1, %c0_2] : memref<32x512xbf16, #tpu.memory_space<vmem>>, vector<32x512xbf16>
    %cst = arith.constant dense<0.000000e+00> : vector<32x512xf32>
    %2 = tpu.matmul %0, %1, %cst {dimension_numbers = #tpu.dot_dimension_numbers<[1], [0], [0], [1], [0, 0, 1, 1], [], []>} : vector<32x32xbf16>, vector<32x512xbf16>, vector<32x512xf32> -> vector<32x512xf32>
    %c0_3 = arith.constant 0 : index
    %c0_4 = arith.constant 0 : index
    %3 = vector.load %arg3[%c0_3, %c0_4] : memref<1x512xf32, #tpu.memory_space<vmem>>, vector<1x512xf32>
    %4 = vector.broadcast %3 : vector<1x512xf32> to vector<32x512xf32>
    %5 = arith.addf %2, %4 : vector<32x512xf32>
    %cst_5 = arith.constant 0.000000e+00 : f32
    %6 = vector.broadcast %cst_5 : f32 to vector<32x512xf32>
    %7 = arith.maximumf %5, %6 : vector<32x512xf32>
    %8 = arith.truncf %7 : vector<32x512xf32> to vector<32x512xbf16>
    %c0_6 = arith.constant 0 : index
    %c0_7 = arith.constant 0 : index
    %9 = vector.load %arg4[%c0_6, %c0_7] : memref<512x256xbf16, #tpu.memory_space<vmem>>, vector<512x256xbf16>
    %cst_8 = arith.constant dense<0.000000e+00> : vector<32x256xf32>
    %10 = tpu.matmul %8, %9, %cst_8 {dimension_numbers = #tpu.dot_dimension_numbers<[1], [0], [0], [1], [0, 0, 1, 1], [], []>} : vector<32x512xbf16>, vector<512x256xbf16>, vector<32x256xf32> -> vector<32x256xf32>
    %c0_9 = arith.constant 0 : index
    %c0_10 = arith.constant 0 : index
    %11 = vector.load %arg5[%c0_9, %c0_10] : memref<1x256xf32, #tpu.memory_space<vmem>>, vector<1x256xf32>
    %12 = vector.broadcast %11 : vector<1x256xf32> to vector<32x256xf32>
    %13 = arith.addf %10, %12 : vector<32x256xf32>
    %cst_11 = arith.constant 0.000000e+00 : f32
    %14 = vector.broadcast %cst_11 : f32 to vector<32x256xf32>
    %15 = arith.maximumf %13, %14 : vector<32x256xf32>
    %16 = arith.truncf %15 : vector<32x256xf32> to vector<32x256xbf16>
    %c0_12 = arith.constant 0 : index
    %c0_13 = arith.constant 0 : index
    %17 = vector.load %arg6[%c0_12, %c0_13] : memref<256x128xbf16, #tpu.memory_space<vmem>>, vector<256x128xbf16>
    %cst_14 = arith.constant dense<0.000000e+00> : vector<32x128xf32>
    %18 = tpu.matmul %16, %17, %cst_14 {dimension_numbers = #tpu.dot_dimension_numbers<[1], [0], [0], [1], [0, 0, 1, 1], [], []>} : vector<32x256xbf16>, vector<256x128xbf16>, vector<32x128xf32> -> vector<32x128xf32>
    %c0_15 = arith.constant 0 : index
    %c0_16 = arith.constant 0 : index
    %19 = vector.load %arg7[%c0_15, %c0_16] : memref<1x128xf32, #tpu.memory_space<vmem>>, vector<1x128xf32>
    %20 = vector.broadcast %19 : vector<1x128xf32> to vector<32x128xf32>
    %21 = arith.addf %18, %20 : vector<32x128xf32>
    %cst_17 = arith.constant 0.000000e+00 : f32
    %22 = vector.broadcast %cst_17 : f32 to vector<32x128xf32>
    %23 = arith.maximumf %21, %22 : vector<32x128xf32>
    %24 = arith.truncf %23 : vector<32x128xf32> to vector<32x128xbf16>
    %c0_18 = arith.constant 0 : index
    %c0_19 = arith.constant 0 : index
    %25 = vector.load %arg8[%c0_18, %c0_19] : memref<128x128xbf16, #tpu.memory_space<vmem>>, vector<128x128xbf16>
    %cst_20 = arith.constant dense<0.000000e+00> : vector<32x128xf32>
    %26 = tpu.matmul %24, %25, %cst_20 {dimension_numbers = #tpu.dot_dimension_numbers<[1], [0], [0], [1], [0, 0, 1, 1], [], []>} : vector<32x128xbf16>, vector<128x128xbf16>, vector<32x128xf32> -> vector<32x128xf32>
    %c0_21 = arith.constant 0 : index
    %c0_22 = arith.constant 0 : index
    %27 = vector.load %arg9[%c0_21, %c0_22] : memref<1x128xf32, #tpu.memory_space<vmem>>, vector<1x128xf32>
    %28 = vector.broadcast %27 : vector<1x128xf32> to vector<32x128xf32>
    %29 = arith.addf %26, %28 : vector<32x128xf32>
    %c0_23 = arith.constant 0 : index
    %c0_24 = arith.constant 0 : index
    %30 = vector.load %arg10[%c0_23, %c0_24] : memref<32x128xf32, #tpu.memory_space<vmem>>, vector<32x128xf32>
    tpu.vector_store %arg10[%c0_23, %c0_24], %29 {strides = array<i32>} : memref<32x128xf32, #tpu.memory_space<vmem>>, vector<32x128xf32>,
    return
  }
  func.func @transform_0(%arg0: i32) -> (i32, i32) {
    %c0_i32 = arith.constant 0 : i32
    %c0_i32_0 = arith.constant 0 : i32
    return %arg0, %c0_i32 : i32, i32
  }
  func.func @transform_1(%arg0: i32) -> (i32, i32) {
    %c0_i32 = arith.constant 0 : i32
    %c0_i32_0 = arith.constant 0 : i32
    %c0_i32_1 = arith.constant 0 : i32
    return %c0_i32, %c0_i32_0 : i32, i32
  }
  func.func @transform_2(%arg0: i32) -> (i32, i32) {
    %c0_i32 = arith.constant 0 : i32
    %c0_i32_0 = arith.constant 0 : i32
    %c0_i32_1 = arith.constant 0 : i32
    return %c0_i32, %c0_i32_0 : i32, i32
  }
  func.func @transform_3(%arg0: i32) -> (i32, i32) {
    %c0_i32 = arith.constant 0 : i32
    %c0_i32_0 = arith.constant 0 : i32
    %c0_i32_1 = arith.constant 0 : i32
    return %c0_i32, %c0_i32_0 : i32, i32
  }
  func.func @transform_4(%arg0: i32) -> (i32, i32) {
    %c0_i32 = arith.constant 0 : i32
    %c0_i32_0 = arith.constant 0 : i32
    %c0_i32_1 = arith.constant 0 : i32
    return %c0_i32, %c0_i32_0 : i32, i32
  }
  func.func @transform_5(%arg0: i32) -> (i32, i32) {
    %c0_i32 = arith.constant 0 : i32
    %c0_i32_0 = arith.constant 0 : i32
    %c0_i32_1 = arith.constant 0 : i32
    return %c0_i32, %c0_i32_0 : i32, i32
  }
  func.func @transform_6(%arg0: i32) -> (i32, i32) {
    %c0_i32 = arith.constant 0 : i32
    %c0_i32_0 = arith.constant 0 : i32
    %c0_i32_1 = arith.constant 0 : i32
    return %c0_i32, %c0_i32_0 : i32, i32
  }
  func.func @transform_7(%arg0: i32) -> (i32, i32) {
    %c0_i32 = arith.constant 0 : i32
    %c0_i32_0 = arith.constant 0 : i32
    %c0_i32_1 = arith.constant 0 : i32
    return %c0_i32, %c0_i32_0 : i32, i32
  }
  func.func @transform_8(%arg0: i32) -> (i32, i32) {
    %c0_i32 = arith.constant 0 : i32
    %c0_i32_0 = arith.constant 0 : i32
    %c0_i32_1 = arith.constant 0 : i32
    return %c0_i32, %c0_i32_0 : i32, i32
  }
  func.func @transform_9(%arg0: i32) -> (i32, i32) {
    %c0_i32 = arith.constant 0 : i32
    %c0_i32_0 = arith.constant 0 : i32
    return %arg0, %c0_i32 : i32, i32
  }
}

</mosaic_0001>

<llo_original>
// kernel: tpu_custom_call.1
$region0: #{tpu_custom_call.1}
  #allocation0 [shape = 'u32[]', space=smem, size = 0x4, offset = 0x4, fixed_abs, tag = 'smem constant byte address 0x4 - core index']
  #allocation1 [shape = 'u32[144,128]{1,0:T(1,128)}', space=vmem, size = 0x12000, scoped, tag = 'internal scratch']
  %s0 = inlined_call_operand.vmem [shape: bf16[64,32], index: 0, kind: input, shape index: {}]
  %s1 = inlined_call_operand.hbm [shape: bf16[32,512], index: 1, kind: input, shape index: {}]
  %s2 = inlined_call_operand.vmem [shape: f32[1,512], index: 2, kind: input, shape index: {}]
  %s3 = inlined_call_operand.hbm [shape: bf16[512,256], index: 3, kind: input, shape index: {}]
  %s4 = inlined_call_operand.vmem [shape: f32[1,256], index: 4, kind: input, shape index: {}]
  %s5 = inlined_call_operand.hbm [shape: bf16[256,128], index: 5, kind: input, shape index: {}]
  %s6 = inlined_call_operand.vmem [shape: f32[1,128], index: 6, kind: input, shape index: {}]
  %s7 = inlined_call_operand.hbm [shape: bf16[128,128], index: 7, kind: input, shape index: {}]
  %s8 = inlined_call_operand.vmem [shape: f32[1,128], index: 8, kind: input, shape index: {}]
  %s9 = inlined_call_operand.hbm [shape: f32[64,128], index: 9, kind: output, shape index: {}]
  %s10 = sld [smem:[#allocation0]]
  $region85: #{tpu_custom_call.1} parent=0
    _
  %s12 = ssub.s32 1, %s10
  %s13 = scalar_select 0, %s12, %s10
  $region1: #{tpu_custom_call.1} parent=0
    #allocation2 [shape = 'u8[32768]{0}', space=vmem, size = 0x8000, scoped, tag = 'input window, operand 1, single buffered']
    #allocation3 [shape = 's32[2]{0}', space=sflag, size = 0x8, scoped, tag = 'scoped memory for tpu_custom_call.1']
    #allocation4 [shape = 's32[2]{0}', space=sflag, size = 0x8, scoped, tag = 'scoped memory for tpu_custom_call.1']
    #allocation5 [shape = 'u8[262144]{0}', space=vmem, size = 0x40000, scoped, tag = 'input window, operand 3, single buffered']
    #allocation6 [shape = 's32[1]{0}', space=sflag, size = 0x4, scoped, tag = 'scoped memory for tpu_custom_call.1']
    #allocation7 [shape = 'u8[65536]{0}', space=vmem, size = 0x10000, scoped, tag = 'input window, operand 5, single buffered']
    #allocation8 [shape = 'u8[32768]{0}', space=vmem, size = 0x8000, scoped, tag = 'input window, operand 7, single buffered']
    #allocation9 [shape = 's32[1]{0}', space=sflag, size = 0x4, scoped, tag = 'scoped memory for tpu_custom_call.1']
    #allocation10 [shape = 'u8[32768]{0}', space=vmem, size = 0x8000, scoped, tag = 'output window, operand 0']
    %14 = vsyncpa [#allocation3], 0
    %15 = vsyncpa [#allocation6], 0
    %16 = vsyncpa [#allocation9], 0
    %17 = vsyncpa [#allocation4], 0
    %s18 = scalar_lea.sflag [#allocation4], 1
    %19 = vsyncpa %s18, 0
    loop: start=0, step=1, limit=4
    $region2: #{tpu_custom_call.1} parent=1 // loop_pre_header
      _
    $region3: #{tpu_custom_call.1} parent=1 // loop_header
      %s21 = sphi 0, %s25
      %p22 = scmp.ge.s32.totalorder %s21, 4
      %s31 = sphi 0, %s33
      %s34 = sphi 0, %s31
      %s35 = sphi 0, %s34
      %s51 = sphi 0, %s35
      %s55 = sphi 0, %s55
      %s57 = sphi 0, %s55
      %s58 = sphi 0, %s57
      %s72 = sphi 0, %s58
      %s76 = sphi 0, %s76
      %s78 = sphi 0, %s76
      %s79 = sphi 0, %s78
      %s93 = sphi 0, %s79
      %s97 = sphi 0, %s97
      %s99 = sphi 0, %s97
      %s100 = sphi 0, %s99
      %s114 = sphi 0, %s100
      %s118 = sphi 0, %s118
      %s120 = sphi 0, %s118
      %s121 = sphi 0, %s120
      %s135 = sphi 0, %s121
      %s139 = sphi 0, %s139
      %s141 = sphi 0, %s139
      %s142 = sphi 0, %s141
      %s156 = sphi 0, %s142
      %s160 = sphi 0, %s160
      %s162 = sphi 0, %s160
      %s163 = sphi 0, %s162
      %s177 = sphi 0, %s163
      %s181 = sphi 0, %s181
      %s183 = sphi 0, %s181
      %s184 = sphi 0, %s183
      %s198 = sphi 0, %s184
      %s202 = sphi 0, %s202
      %s204 = sphi 0, %s202
      %s205 = sphi 0, %s204
      %s219 = sphi 0, %s205
      %s225 = sphi 0, %s227
      %s228 = sphi 0, %s225
      %s229 = sphi 0, %s228
      %s245 = sphi 0, %s229
    $region4: #{tpu_custom_call.1} parent=1 // loop_header_branch
      %24 = sbr.rel (%p22) target = $region8
    $region5: #{tpu_custom_call.1} parent=1 // loop_body
      %s26 = ssub.s32 %s21, 1
      %s27 = ssub.s32 %s21, 2
      %s28 = sadd.s32 %s21, 1
      %s29 = ssub.s32 %s21, %s28
      %p30 = scmp.eq.s32.totalorder %s29, 0
      %s32 = sadd.s32 %s31, 1
      %s33 = scalar_select %p30, %s31, %s32
      %p36 = pneg %p30
      %p37 = scmp.eq.s32.totalorder %s21, 1
      %p38 = por %p36, %p37
      %p39 = scmp.ne.s32.totalorder %s31, %s34
      %p40 = scmp.eq.s32.totalorder %s21, 0
      %p41 = por %p39, %p40
      %p42 = scmp.ne.s32.totalorder %s31, %s34
      %p43 = scmp.eq.s32.totalorder %s26, 1
      %p44 = por %p42, %p43
      %p45 = scmp.ne.s32.totalorder %s34, %s35
      %p46 = scmp.eq.s32.totalorder %s26, 0
      %p47 = por %p45, %p46
      %p48 = scmp.ne.s32.totalorder %s34, %s35
      %p49 = scmp.eq.s32.totalorder %s27, 1
      %p50 = por %p48, %p49
      %p52 = scmp.ne.s32.totalorder %s35, %s51
      %p53 = scmp.eq.s32.totalorder %s27, 0
      %p54 = por %p52, %p53
      %s56 = sadd.s32 %s55, 1
      %p59 = scmp.eq.s32.totalorder %s21, 1
      %p60 = scmp.ne.s32.totalorder %s55, %s57
      %p61 = scmp.eq.s32.totalorder %s21, 0
      %p62 = por %p60, %p61
      %p63 = scmp.ne.s32.totalorder %s55, %s57
      %p64 = scmp.eq.s32.totalorder %s26, 1
      %p65 = por %p63, %p64
      %p66 = scmp.ne.s32.totalorder %s57, %s58
      %p67 = scmp.eq.s32.totalorder %s26, 0
      %p68 = por %p66, %p67
      %p69 = scmp.ne.s32.totalorder %s57, %s58
      %p70 = scmp.eq.s32.totalorder %s27, 1
      %p71 = por %p69, %p70
      %p73 = scmp.ne.s32.totalorder %s58, %s72
      %p74 = scmp.eq.s32.totalorder %s27, 0
      %p75 = por %p73, %p74
      %s77 = sadd.s32 %s76, 1
      %p80 = scmp.eq.s32.totalorder %s21, 1
      %p81 = scmp.ne.s32.totalorder %s76, %s78
      %p82 = scmp.eq.s32.totalorder %s21, 0
      %p83 = por %p81, %p82
      %p84 = scmp.ne.s32.totalorder %s76, %s78
      %p85 = scmp.eq.s32.totalorder %s26, 1
      %p86 = por %p84, %p85
      %p87 = scmp.ne.s32.totalorder %s78, %s79
      %p88 = scmp.eq.s32.totalorder %s26, 0
      %p89 = por %p87, %p88
      %p90 = scmp.ne.s32.totalorder %s78, %s79
      %p91 = scmp.eq.s32.totalorder %s27, 1
      %p92 = por %p90, %p91
      %p94 = scmp.ne.s32.totalorder %s79, %s93
      %p95 = scmp.eq.s32.totalorder %s27, 0
      %p96 = por %p94, %p95
      %s98 = sadd.s32 %s97, 1
      %p101 = scmp.eq.s32.totalorder %s21, 1
      %p102 = scmp.ne.s32.totalorder %s97, %s99
      %p103 = scmp.eq.s32.totalorder %s21, 0
      %p104 = por %p102, %p103
      %p105 = scmp.ne.s32.totalorder %s97, %s99
      %p106 = scmp.eq.s32.totalorder %s26, 1
      %p107 = por %p105, %p106
      %p108 = scmp.ne.s32.totalorder %s99, %s100
      %p109 = scmp.eq.s32.totalorder %s26, 0
      %p110 = por %p108, %p109
      %p111 = scmp.ne.s32.totalorder %s99, %s100
      %p112 = scmp.eq.s32.totalorder %s27, 1
      %p113 = por %p111, %p112
      %p115 = scmp.ne.s32.totalorder %s100, %s114
      %p116 = scmp.eq.s32.totalorder %s27, 0
      %p117 = por %p115, %p116
      %s119 = sadd.s32 %s118, 1
      %p122 = scmp.eq.s32.totalorder %s21, 1
      %p123 = scmp.ne.s32.totalorder %s118, %s120
      %p124 = scmp.eq.s32.totalorder %s21, 0
      %p125 = por %p123, %p124
      %p126 = scmp.ne.s32.totalorder %s118, %s120
      %p127 = scmp.eq.s32.totalorder %s26, 1
      %p128 = por %p126, %p127
      %p129 = scmp.ne.s32.totalorder %s120, %s121
      %p130 = scmp.eq.s32.totalorder %s26, 0
      %p131 = por %p129, %p130
      %p132 = scmp.ne.s32.totalorder %s120, %s121
      %p133 = scmp.eq.s32.totalorder %s27, 1
      %p134 = por %p132, %p133
      %p136 = scmp.ne.s32.totalorder %s121, %s135
      %p137 = scmp.eq.s32.totalorder %s27, 0
      %p138 = por %p136, %p137
      %s140 = sadd.s32 %s139, 1
      %p143 = scmp.eq.s32.totalorder %s21, 1
      %p144 = scmp.ne.s32.totalorder %s139, %s141
      %p145 = scmp.eq.s32.totalorder %s21, 0
      %p146 = por %p144, %p145
      %p147 = scmp.ne.s32.totalorder %s139, %s141
      %p148 = scmp.eq.s32.totalorder %s26, 1
      %p149 = por %p147, %p148
      %p150 = scmp.ne.s32.totalorder %s141, %s142
      %p151 = scmp.eq.s32.totalorder %s26, 0
      %p152 = por %p150, %p151
      %p153 = scmp.ne.s32.totalorder %s141, %s142
      %p154 = scmp.eq.s32.totalorder %s27, 1
      %p155 = por %p153, %p154
      %p157 = scmp.ne.s32.totalorder %s142, %s156
      %p158 = scmp.eq.s32.totalorder %s27, 0
      %p159 = por %p157, %p158
      %s161 = sadd.s32 %s160, 1
      %p164 = scmp.eq.s32.totalorder %s21, 1
      %p165 = scmp.ne.s32.totalorder %s160, %s162
      %p166 = scmp.eq.s32.totalorder %s21, 0
      %p167 = por %p165, %p166
      %p168 = scmp.ne.s32.totalorder %s160, %s162
      %p169 = scmp.eq.s32.totalorder %s26, 1
      %p170 = por %p168, %p169
      %p171 = scmp.ne.s32.totalorder %s162, %s163
      %p172 = scmp.eq.s32.totalorder %s26, 0
      %p173 = por %p171, %p172
      %p174 = scmp.ne.s32.totalorder %s162, %s163
      %p175 = scmp.eq.s32.totalorder %s27, 1
      %p176 = por %p174, %p175
      %p178 = scmp.ne.s32.totalorder %s163, %s177
      %p179 = scmp.eq.s32.totalorder %s27, 0
      %p180 = por %p178, %p179
      %s182 = sadd.s32 %s181, 1
      %p185 = scmp.eq.s32.totalorder %s21, 1
      %p186 = scmp.ne.s32.totalorder %s181, %s183
      %p187 = scmp.eq.s32.totalorder %s21, 0
      %p188 = por %p186, %p187
      %p189 = scmp.ne.s32.totalorder %s181, %s183
      %p190 = scmp.eq.s32.totalorder %s26, 1
      %p191 = por %p189, %p190
      %p192 = scmp.ne.s32.totalorder %s183, %s184
      %p193 = scmp.eq.s32.totalorder %s26, 0
      %p194 = por %p192, %p193
      %p195 = scmp.ne.s32.totalorder %s183, %s184
      %p196 = scmp.eq.s32.totalorder %s27, 1
      %p197 = por %p195, %p196
      %p199 = scmp.ne.s32.totalorder %s184, %s198
      %p200 = scmp.eq.s32.totalorder %s27, 0
      %p201 = por %p199, %p200
      %s203 = sadd.s32 %s202, 1
      %p206 = scmp.eq.s32.totalorder %s21, 1
      %p207 = scmp.ne.s32.totalorder %s202, %s204
      %p208 = scmp.eq.s32.totalorder %s21, 0
      %p209 = por %p207, %p208
      %p210 = scmp.ne.s32.totalorder %s202, %s204
      %p211 = scmp.eq.s32.totalorder %s26, 1
      %p212 = por %p210, %p211
      %p213 = scmp.ne.s32.totalorder %s204, %s205
      %p214 = scmp.eq.s32.totalorder %s26, 0
      %p215 = por %p213, %p214
      %p216 = scmp.ne.s32.totalorder %s204, %s205
      %p217 = scmp.eq.s32.totalorder %s27, 1
      %p218 = por %p216, %p217
      %p220 = scmp.ne.s32.totalorder %s205, %s219
      %p221 = scmp.eq.s32.totalorder %s27, 0
      %p222 = por %p220, %p221
      %s223 = ssub.s32 %s21, %s28
      %p224 = scmp.eq.s32.totalorder %s223, 0
      %s226 = sadd.s32 %s225, 1
      %s227 = scalar_select %p224, %s225, %s226
      %p230 = pneg %p224
      %p231 = scmp.eq.s32.totalorder %s21, 1
      %p232 = por %p230, %p231
      %p233 = scmp.ne.s32.totalorder %s225, %s228
      %p234 = scmp.eq.s32.totalorder %s21, 0
      %p235 = por %p233, %p234
      %p236 = scmp.ne.s32.totalorder %s225, %s228
      %p237 = scmp.eq.s32.totalorder %s26, 1
      %p238 = por %p236, %p237
      %p239 = scmp.ne.s32.totalorder %s228, %s229
      %p240 = scmp.eq.s32.totalorder %s26, 0
      %p241 = por %p239, %p240
      %p242 = scmp.ne.s32.totalorder %s228, %s229
      %p243 = scmp.eq.s32.totalorder %s27, 1
      %p244 = por %p242, %p243
      %p246 = scmp.ne.s32.totalorder %s229, %s245
      %p247 = scmp.eq.s32.totalorder %s27, 0
      %p248 = por %p246, %p247
      %p249 = scmp.le.s32.totalorder 1, %s21
      %p250 = scmp.lt.s32.totalorder %s21, 3
      %p251 = pnand %p249, %p250
      %p252 = pneg %p251
      // Predicated region
      $region9: #{tpu_custom_call.1} parent=5 // pred_check
        _
      $region10: #{tpu_custom_call.1} parent=5 // pred_check_branch
        %254 = sbr.rel (%p251) target = $region12
      $region11: #{tpu_custom_call.1} parent=5 // pred_region
        %s255 = ssub.s32 %s21, 1
        // Predicated region
        $region13: #{tpu_custom_call.1} parent=11 // pred_check
          %p256 = pneg %p68
        $region14: #{tpu_custom_call.1} parent=11 // pred_check_branch
          %258 = sbr.rel (%p256) target = $region16
        $region15: #{tpu_custom_call.1} parent=11 // pred_region
          %s260 = ssub.s32 1024, 1024
          %261 = vsyncadd [#allocation3], %s260
          %s262 = sshll.u32 [#allocation2], 4
          %s263 = int_to_ptr.vmem [resolvable:$true] %s262
          %268 = dma.hbm_to_vmem [thread:$0]  %s1, 1024, %s263, [#allocation3], 256, 256, 16
        $region16: #{tpu_custom_call.1} parent=11 // pred_fallthru
          _
        // Predicated region
        $region17: #{tpu_custom_call.1} parent=11 // pred_check
          %p269 = pneg %p89
        $region18: #{tpu_custom_call.1} parent=11 // pred_check_branch
          %271 = sbr.rel (%p269) target = $region20
        $region19: #{tpu_custom_call.1} parent=11 // pred_region
          _
        $region20: #{tpu_custom_call.1} parent=11 // pred_fallthru
          _
        // Predicated region
        $region21: #{tpu_custom_call.1} parent=11 // pred_check
          %p272 = pneg %p110
        $region22: #{tpu_custom_call.1} parent=11 // pred_check_branch
          %274 = sbr.rel (%p272) target = $region24
        $region23: #{tpu_custom_call.1} parent=11 // pred_region
          %s276 = ssub.s32 8192, 8192
          %277 = vsyncadd [#allocation6], %s276
          %s278 = sshll.u32 [#allocation5], 4
          %s279 = int_to_ptr.vmem [resolvable:$true] %s278
          %284 = dma.hbm_to_vmem [thread:$0]  %s3, 8192, %s279, [#allocation6], 128, 128, 8
        $region24: #{tpu_custom_call.1} parent=11 // pred_fallthru
          _
        // Predicated region
        $region25: #{tpu_custom_call.1} parent=11 // pred_check
          %p285 = pneg %p131
        $region26: #{tpu_custom_call.1} parent=11 // pred_check_branch
          %287 = sbr.rel (%p285) target = $region28
        $region27: #{tpu_custom_call.1} parent=11 // pred_region
          _
        $region28: #{tpu_custom_call.1} parent=11 // pred_fallthru
          _
        // Predicated region
        $region29: #{tpu_custom_call.1} parent=11 // pred_check
          %p288 = pneg %p152
        $region30: #{tpu_custom_call.1} parent=11 // pred_check_branch
          %290 = sbr.rel (%p288) target = $region32
        $region31: #{tpu_custom_call.1} parent=11 // pred_region
          %s292 = ssub.s32 2048, 2048
          %293 = vsyncadd [#allocation6], %s292
          %s294 = sshll.u32 [#allocation7], 4
          %s295 = int_to_ptr.vmem [resolvable:$true] %s294
          %300 = dma.hbm_to_vmem [thread:$0]  %s5, 2048, %s295, [#allocation6], 64, 64, 4
        $region32: #{tpu_custom_call.1} parent=11 // pred_fallthru
          _
        // Predicated region
        $region33: #{tpu_custom_call.1} parent=11 // pred_check
          %p301 = pneg %p173
        $region34: #{tpu_custom_call.1} parent=11 // pred_check_branch
          %303 = sbr.rel (%p301) target = $region36
        $region35: #{tpu_custom_call.1} parent=11 // pred_region
          _
        $region36: #{tpu_custom_call.1} parent=11 // pred_fallthru
          _
        // Predicated region
        $region37: #{tpu_custom_call.1} parent=11 // pred_check
          %p304 = pneg %p194
        $region38: #{tpu_custom_call.1} parent=11 // pred_check_branch
          %306 = sbr.rel (%p304) target = $region40
        $region39: #{tpu_custom_call.1} parent=11 // pred_region
          %s308 = ssub.s32 1024, 1024
          %309 = vsyncadd [#allocation9], %s308
          %s310 = sshll.u32 [#allocation8], 4
          %s311 = int_to_ptr.vmem [resolvable:$true] %s310
          %316 = dma.hbm_to_vmem [thread:$0]  %s7, 1024, %s311, [#allocation9], 64, 64, 4
        $region40: #{tpu_custom_call.1} parent=11 // pred_fallthru
          _
        // Predicated region
        $region41: #{tpu_custom_call.1} parent=11 // pred_check
          %p317 = pneg %p215
        $region42: #{tpu_custom_call.1} parent=11 // pred_check_branch
          %319 = sbr.rel (%p317) target = $region44
        $region43: #{tpu_custom_call.1} parent=11 // pred_region
          _
        $region44: #{tpu_custom_call.1} parent=11 // pred_fallthru
          _
      $region12: #{tpu_custom_call.1} parent=5 // pred_fallthru
        _
      %p320 = scmp.lt.s32.totalorder %s21, 2
      // Predicated region
      $region45: #{tpu_custom_call.1} parent=5 // pred_check
        %p321 = pneg %p320
      $region46: #{tpu_custom_call.1} parent=5 // pred_check_branch
        %323 = sbr.rel (%p321) target = $region48
      $region47: #{tpu_custom_call.1} parent=5 // pred_region
        // Predicated region
        $region49: #{tpu_custom_call.1} parent=47 // pred_check
          %p324 = pneg %p41
        $region50: #{tpu_custom_call.1} parent=47 // pred_check_branch
          %326 = sbr.rel (%p324) target = $region52
        $region51: #{tpu_custom_call.1} parent=47 // pred_region
          %s327 = smul.u32 4, %s21
          %p328 = scmp.lt.s32.totalorder %s327, 7
          %s329 = scalar_select %p328, %s327, 7
          %s330 = smul.addr %s329, 4
          %s331 = scalar_lea.vmem %s0, %s330
          %s332 = smul.u32 4, %s21
        $region52: #{tpu_custom_call.1} parent=47 // pred_fallthru
          _
      $region48: #{tpu_custom_call.1} parent=5 // pred_fallthru
        _
      %p333 = scmp.le.s32.totalorder 1, %s21
      %p334 = scmp.lt.s32.totalorder %s21, 3
      %p335 = pnand %p333, %p334
      %p336 = pneg %p335
      // Predicated region
      $region53: #{tpu_custom_call.1} parent=5 // pred_check
        _
      $region54: #{tpu_custom_call.1} parent=5 // pred_check_branch
        %338 = sbr.rel (%p335) target = $region56
      $region55: #{tpu_custom_call.1} parent=5 // pred_region
        %s339 = ssub.s32 %s21, 1
        // Predicated region
        $region57: #{tpu_custom_call.1} parent=55 // pred_check
          %p340 = pneg %p68
        $region58: #{tpu_custom_call.1} parent=55 // pred_check_branch
          %342 = sbr.rel (%p340) target = $region60
        $region59: #{tpu_custom_call.1} parent=55 // pred_region
          %343 = dma.done [#allocation3], 1024
        $region60: #{tpu_custom_call.1} parent=55 // pred_fallthru
          _
        // Predicated region
        $region61: #{tpu_custom_call.1} parent=55 // pred_check
          %p344 = pneg %p110
        $region62: #{tpu_custom_call.1} parent=55 // pred_check_branch
          %346 = sbr.rel (%p344) target = $region64
        $region63: #{tpu_custom_call.1} parent=55 // pred_region
          %347 = dma.done [#allocation6], 8192
        $region64: #{tpu_custom_call.1} parent=55 // pred_fallthru
          _
        // Predicated region
        $region65: #{tpu_custom_call.1} parent=55 // pred_check
          %p348 = pneg %p152
        $region66: #{tpu_custom_call.1} parent=55 // pred_check_branch
          %350 = sbr.rel (%p348) target = $region68
        $region67: #{tpu_custom_call.1} parent=55 // pred_region
          %351 = dma.done [#allocation6], 2048
        $region68: #{tpu_custom_call.1} parent=55 // pred_fallthru
          _
        // Predicated region
        $region69: #{tpu_custom_call.1} parent=55 // pred_check
          %p352 = pneg %p194
        $region70: #{tpu_custom_call.1} parent=55 // pred_check_branch
          %354 = sbr.rel (%p352) target = $region72
        $region71: #{tpu_custom_call.1} parent=55 // pred_region
          %355 = dma.done [#allocation9], 1024
        $region72: #{tpu_custom_call.1} parent=55 // pred_fallthru
          _
        %s356 = smul.u32 4, %s26
        %p357 = scmp.lt.s32.totalorder %s356, 7
        %s358 = scalar_select %p357, %s356, 7
        %s359 = smul.addr %s358, 4
        %s360 = scalar_lea.vmem %s0, %s359
        %p361 = pneg %p47
        %p362 = pneg %p44
        %p363 = pneg %p68
        %p364 = pneg %p65
        %p365 = pneg %p89
        %p366 = pneg %p86
        %p367 = pneg %p110
        %p368 = pneg %p107
        %p369 = pneg %p131
        %p370 = pneg %p128
        %p371 = pneg %p152
        %p372 = pneg %p149
        %p373 = pneg %p173
        %p374 = pneg %p170
        %p375 = pneg %p194
        %p376 = pneg %p191
        %p377 = pneg %p215
        %p378 = pneg %p212
        %p379 = pneg %p241
        %p380 = pneg %p238
        %s381 = sand.u32 %s228, 1
        %s382 = scalar_lea.sflag [#allocation4], %s381
        %s383 = sand.u32 %s228, 1
        %s384 = smul.addr %s383, 32
        %s385 = scalar_lea.vmem [#allocation10], %s384
        %s386 = smul.u32 4, %s26
        %p387 = scmp.lt.s32.totalorder %s386, 7
        %s388 = scalar_select %p387, %s386, 7
        %s389 = smul.addr %s388, 4
        %s390 = scalar_lea.vmem %s0, %s389
        %s391 = smul.u32 4, %s26
        %s392 = smul.u32 4, %s26
        %v394 = vld [vmem:[%s390] sm:$0xf]
        %v395 = vld [vmem:[%s390 + $0x4] sm:$0xf]
        %v396 = vld [vmem:[%s390 + $0x8] sm:$0xf]
        %v397 = vld [vmem:[%s390 + $0xc] sm:$0xf]
        %v398 = vld [vmem:[#allocation2] sm:$0xff]
        %v399 = vld [vmem:[#allocation2 + $0x8] sm:$0xff]
        %v400 = vld [vmem:[#allocation2 + $0x10] sm:$0xff]
        %v401 = vld [vmem:[#allocation2 + $0x18] sm:$0xff]
        %v402 = vld [vmem:[#allocation2 + $0x20] sm:$0xff]
        %v403 = vld [vmem:[#allocation2 + $0x28] sm:$0xff]
        %v404 = vld [vmem:[#allocation2 + $0x30] sm:$0xff]
        %v405 = vld [vmem:[#allocation2 + $0x38] sm:$0xff]
        %v406 = vld [vmem:[%s2] sm:$0xf]
        %v408 = vlaneseq
        %v409 = vshrl.u32 %v408, 7
        %v410 = vsub.s32 0, %v409
        %v411 = vrot.slane %v406, %v410
        %v412 = vlaneseq
        %v413 = vshrl.u32 %v412, 7
        %v414 = vsub.s32 1, %v413
        %v415 = vrot.slane %v406, %v414
        %v416 = vlaneseq
        %v417 = vshrl.u32 %v416, 7
        %v418 = vsub.s32 2, %v417
        %v419 = vrot.slane %v406, %v418
        %v420 = vlaneseq
        %v421 = vshrl.u32 %v420, 7
        %v422 = vsub.s32 3, %v421
        %v423 = vrot.slane %v406, %v422
        %v432 = vunpack.c.l.b16 %v394
        %v433 = vunpack.c.l.b16 %v395
        %v434 = vunpack.c.l.b16 %v396
        %v435 = vunpack.c.l.b16 %v397
        %v436 = vpack.c.b16 %v433, %v432
        %v437 = vpack.c.b16 %v435, %v434
        %v446 = vunpack.c.l.b16 %v398
        %v447 = vunpack.c.h.b16 %v398
        %v448 = vunpack.c.l.b16 %v399
        %v449 = vunpack.c.h.b16 %v399
        %v450 = vunpack.c.l.b16 %v400
        %v451 = vunpack.c.h.b16 %v400
        %v452 = vunpack.c.l.b16 %v401
        %v453 = vunpack.c.h.b16 %v401
        %v454 = vunpack.c.l.b16 %v402
        %v455 = vunpack.c.h.b16 %v402
        %v456 = vunpack.c.l.b16 %v403
        %v457 = vunpack.c.h.b16 %v403
        %v458 = vunpack.c.l.b16 %v404
        %v459 = vunpack.c.h.b16 %v404
        %v460 = vunpack.c.l.b16 %v405
        %v461 = vunpack.c.h.b16 %v405
        %v462 = vpack.c.b16 %v450, %v446
        %v463 = vpack.c.b16 %v451, %v447
        %v464 = vpack.c.b16 %v452, %v448
        %v465 = vpack.c.b16 %v453, %v449
        %v466 = vpack.c.b16 %v458, %v454
        %v467 = vpack.c.b16 %v459, %v455
        %v468 = vpack.c.b16 %v460, %v456
        %v469 = vpack.c.b16 %v461, %v457
        %vm478 = vcmask 261120
        %v480 = vsel %vm478, %v436, 0
        %v483 = vsel %vm478, %v437, 0
        %485 = vmatprep.subr.bf16.mxu0 0
        %486 = vmatpush1.bf16.msra.mxu0 0
        %487 = vmatprep.subr.bf16.mxu0 0
        %488 = vmatpush1.bf16.msra.mxu0 0
        %489 = vmatprep.subr.bf16.mxu0 0
        %490 = vmatpush1.bf16.msra.mxu0 0
        %491 = vmatprep.subr.bf16.mxu0 0
        %492 = vmatpush1.bf16.msra.mxu0 0
        %493 = vmatprep.subr.bf16.mxu0 0
        %494 = vmatpush1.bf16.msra.mxu0 0
        %495 = vmatprep.subr.bf16.mxu0 0
        %496 = vmatpush1.bf16.msra.mxu0 0
        %497 = vmatprep.subr.bf16.mxu0 %v467
        %498 = vmatpush1.bf16.msra.mxu0 %v466
        %499 = vmatprep.subr.bf16.mxu0 %v463
        %500 = vmatpush1.bf16.msra.mxu0 %v462
        %501 = vmatprep.subr.bf16.mxu0 0
        %502 = vmatpush2.bf16.msra.mxu0 0
        %503 = vmatprep.subr.bf16.mxu0 0
        %504 = vmatpush2.bf16.msra.mxu0 0
        %505 = vmatprep.subr.bf16.mxu0 0
        %506 = vmatpush2.bf16.msra.mxu0 0
        %507 = vmatprep.subr.bf16.mxu0 0
        %508 = vmatpush2.bf16.msra.mxu0 0
        %509 = vmatprep.subr.bf16.mxu0 0
        %510 = vmatpush2.bf16.msra.mxu0 0
        %511 = vmatprep.subr.bf16.mxu0 0
        %512 = vmatpush2.bf16.msra.mxu0 0
        %513 = vmatprep.subr.bf16.mxu0 0
        %514 = vmatpush2.bf16.msra.mxu0 0
        %515 = vmatprep.subr.bf16.mxu0 0
        %516 = vmatpush2.bf16.msra.mxu0 0
        %517 = vmatprep.mubr.bf16.mxu0 0
        %518 = vmatmul.mubr.bf16.gmra.mxu0 %v480
        %v519 = vpop.f32.mrf.mxu0
        %v520 = vadd.f32 %v411, %v519
        %v521 = vpop.f32.mrf.mxu0
        %v522 = vadd.f32 %v415, %v521
        %v523 = vpop.f32.mrf.mxu0
        %v524 = vadd.f32 %v411, %v523
        %v525 = vpop.f32.mrf.mxu0
        %v526 = vadd.f32 %v415, %v525
        %527 = vmatprep.mubr.bf16.mxu0 0
        %528 = vmatmul.mubr.bf16.gmra.mxu0 %v483
        %v529 = vpop.f32.mrf.mxu0
        %v530 = vadd.f32 %v411, %v529
        %v531 = vpop.f32.mrf.mxu0
        %v532 = vadd.f32 %v415, %v531
        %v533 = vpop.f32.mrf.mxu0
        %v534 = vadd.f32 %v411, %v533
        %v535 = vpop.f32.mrf.mxu0
        %v536 = vadd.f32 %v415, %v535
        %537 = vdwg.mxu0
        %538 = vmatprep.subr.bf16.mxu0 0
        %539 = vmatpush1.bf16.msra.mxu0 0
        %540 = vmatprep.subr.bf16.mxu0 0
        %541 = vmatpush1.bf16.msra.mxu0 0
        %542 = vmatprep.subr.bf16.mxu0 0
        %543 = vmatpush1.bf16.msra.mxu0 0
        %544 = vmatprep.subr.bf16.mxu0 0
        %545 = vmatpush1.bf16.msra.mxu0 0
        %546 = vmatprep.subr.bf16.mxu0 0
        %547 = vmatpush1.bf16.msra.mxu0 0
        %548 = vmatprep.subr.bf16.mxu0 0
        %549 = vmatpush1.bf16.msra.mxu0 0
        %550 = vmatprep.subr.bf16.mxu0 %v469
        %551 = vmatpush1.bf16.msra.mxu0 %v468
        %552 = vmatprep.subr.bf16.mxu0 %v465
        %553 = vmatpush1.bf16.msra.mxu0 %v464
        %554 = vmatprep.subr.bf16.mxu0 0
        %555 = vmatpush2.bf16.msra.mxu0 0
        %556 = vmatprep.subr.bf16.mxu0 0
        %557 = vmatpush2.bf16.msra.mxu0 0
        %558 = vmatprep.subr.bf16.mxu0 0
        %559 = vmatpush2.bf16.msra.mxu0 0
        %560 = vmatprep.subr.bf16.mxu0 0
        %561 = vmatpush2.bf16.msra.mxu0 0
        %562 = vmatprep.subr.bf16.mxu0 0
        %563 = vmatpush2.bf16.msra.mxu0 0
        %564 = vmatprep.subr.bf16.mxu0 0
        %565 = vmatpush2.bf16.msra.mxu0 0
        %566 = vmatprep.subr.bf16.mxu0 0
        %567 = vmatpush2.bf16.msra.mxu0 0
        %568 = vmatprep.subr.bf16.mxu0 0
        %569 = vmatpush2.bf16.msra.mxu0 0
        %570 = vmatprep.mubr.bf16.mxu0 0
        %571 = vmatmul.mubr.bf16.gmra.mxu0 %v480
        %v572 = vpop.f32.mrf.mxu0
        %v573 = vadd.f32 %v419, %v572
        %v574 = vpop.f32.mrf.mxu0
        %v575 = vadd.f32 %v423, %v574
        %v576 = vpop.f32.mrf.mxu0
        %v577 = vadd.f32 %v419, %v576
        %v578 = vpop.f32.mrf.mxu0
        %v579 = vadd.f32 %v423, %v578
        %580 = vmatprep.mubr.bf16.mxu0 0
        %581 = vmatmul.mubr.bf16.gmra.mxu0 %v483
        %v582 = vpop.f32.mrf.mxu0
        %v583 = vadd.f32 %v419, %v582
        %v584 = vpop.f32.mrf.mxu0
        %v585 = vadd.f32 %v423, %v584
        %v586 = vpop.f32.mrf.mxu0
        %v587 = vadd.f32 %v419, %v586
        %v588 = vpop.f32.mrf.mxu0
        %v589 = vadd.f32 %v423, %v588
        %590 = vdwg.mxu0
        %v591 = vmax.f32 %v520, 0.0
        %v592 = vmax.f32 %v522, 0.0
        %v593 = vmax.f32 %v573, 0.0
        %v594 = vmax.f32 %v575, 0.0
        %v595 = vmax.f32 %v524, 0.0
        %v596 = vmax.f32 %v526, 0.0
        %v597 = vmax.f32 %v577, 0.0
        %v598 = vmax.f32 %v579, 0.0
        %v599 = vmax.f32 %v530, 0.0
        %v600 = vmax.f32 %v532, 0.0
        %v601 = vmax.f32 %v583, 0.0
        %v602 = vmax.f32 %v585, 0.0
        %v603 = vmax.f32 %v534, 0.0
        %v604 = vmax.f32 %v536, 0.0
        %v605 = vmax.f32 %v587, 0.0
        %v606 = vmax.f32 %v589, 0.0
        %v607 = vpack.c.bf16 %v595, %v591
        %v608 = vpack.c.bf16 %v596, %v592
        %v609 = vpack.c.bf16 %v597, %v593
        %v610 = vpack.c.bf16 %v598, %v594
        %v611 = vpack.c.bf16 %v603, %v599
        %v612 = vpack.c.bf16 %v604, %v600
        %v613 = vpack.c.bf16 %v605, %v601
        %v614 = vpack.c.bf16 %v606, %v602
        %v615 = vld [vmem:[#allocation5] sm:$0xff]
        %v616 = vld [vmem:[#allocation5 + $0x8] sm:$0xff]
        %v617 = vld [vmem:[#allocation5 + $0x10] sm:$0xff]
        %v618 = vld [vmem:[#allocation5 + $0x18] sm:$0xff]
        %v619 = vld [vmem:[#allocation5 + $0x20] sm:$0xff]
        %v620 = vld [vmem:[#allocation5 + $0x28] sm:$0xff]
        %v621 = vld [vmem:[#allocation5 + $0x30] sm:$0xff]
        %v622 = vld [vmem:[#allocation5 + $0x38] sm:$0xff]
        %v623 = vld [vmem:[#allocation5 + $0x40] sm:$0xff]
        %v624 = vld [vmem:[#allocation5 + $0x48] sm:$0xff]
        %v625 = vld [vmem:[#allocation5 + $0x50] sm:$0xff]
        %v626 = vld [vmem:[#allocation5 + $0x58] sm:$0xff]
        %v627 = vld [vmem:[#allocation5 + $0x60] sm:$0xff]
        %v628 = vld [vmem:[#allocation5 + $0x68] sm:$0xff]
        %v629 = vld [vmem:[#allocation5 + $0x70] sm:$0xff]
        %v630 = vld [vmem:[#allocation5 + $0x78] sm:$0xff]
        %v631 = vld [vmem:[#allocation5 + $0x80] sm:$0xff]
        %v632 = vld [vmem:[#allocation5 + $0x88] sm:$0xff]
        %v633 = vld [vmem:[#allocation5 + $0x90] sm:$0xff]
        %v634 = vld [vmem:[#allocation5 + $0x98] sm:$0xff]
        %v635 = vld [vmem:[#allocation5 + $0xa0] sm:$0xff]
        %v636 = vld [vmem:[#allocation5 + $0xa8] sm:$0xff]
        %v637 = vld [vmem:[#allocation5 + $0xb0] sm:$0xff]
        %v638 = vld [vmem:[#allocation5 + $0xb8] sm:$0xff]
        %v639 = vld [vmem:[#allocation5 + $0xc0] sm:$0xff]
        %v640 = vld [vmem:[#allocation5 + $0xc8] sm:$0xff]
        %v641 = vld [vmem:[#allocation5 + $0xd0] sm:$0xff]
        %v642 = vld [vmem:[#allocation5 + $0xd8] sm:$0xff]
        %v643 = vld [vmem:[#allocation5 + $0xe0] sm:$0xff]
        %v644 = vld [vmem:[#allocation5 + $0xe8] sm:$0xff]
        %v645 = vld [vmem:[#allocation5 + $0xf0] sm:$0xff]
        %v646 = vld [vmem:[#allocation5 + $0xf8] sm:$0xff]
        %v647 = vld [vmem:[#allocation5 + $0x100] sm:$0xff]
        %v648 = vld [vmem:[#allocation5 + $0x108] sm:$0xff]
        %v649 = vld [vmem:[#allocation5 + $0x110] sm:$0xff]
        %v650 = vld [vmem:[#allocation5 + $0x118] sm:$0xff]
        %v651 = vld [vmem:[#allocation5 + $0x120] sm:$0xff]
        %v652 = vld [vmem:[#allocation5 + $0x128] sm:$0xff]
        %v653 = vld [vmem:[#allocation5 + $0x130] sm:$0xff]
        %v654 = vld [vmem:[#allocation5 + $0x138] sm:$0xff]
        %v655 = vld [vmem:[#allocation5 + $0x140] sm:$0xff]
        %v656 = vld [vmem:[#allocation5 + $0x148] sm:$0xff]
        %v657 = vld [vmem:[#allocation5 + $0x150] sm:$0xff]
        %v658 = vld [vmem:[#allocation5 + $0x158] sm:$0xff]
        %v659 = vld [vmem:[#allocation5 + $0x160] sm:$0xff]
        %v660 = vld [vmem:[#allocation5 + $0x168] sm:$0xff]
        %v661 = vld [vmem:[#allocation5 + $0x170] sm:$0xff]
        %v662 = vld [vmem:[#allocation5 + $0x178] sm:$0xff]
        %v663 = vld [vmem:[#allocation5 + $0x180] sm:$0xff]
        %v664 = vld [vmem:[#allocation5 + $0x188] sm:$0xff]
        %v665 = vld [vmem:[#allocation5 + $0x190] sm:$0xff]
        %v666 = vld [vmem:[#allocation5 + $0x198] sm:$0xff]
        %v667 = vld [vmem:[#allocation5 + $0x1a0] sm:$0xff]
        %v668 = vld [vmem:[#allocation5 + $0x1a8] sm:$0xff]
        %v669 = vld [vmem:[#allocation5 + $0x1b0] sm:$0xff]
        %v670 = vld [vmem:[#allocation5 + $0x1b8] sm:$0xff]
        %v671 = vld [vmem:[#allocation5 + $0x1c0] sm:$0xff]
        %v672 = vld [vmem:[#allocation5 + $0x1c8] sm:$0xff]
        %v673 = vld [vmem:[#allocation5 + $0x1d0] sm:$0xff]
        %v674 = vld [vmem:[#allocation5 + $0x1d8] sm:$0xff]
        %v675 = vld [vmem:[#allocation5 + $0x1e0] sm:$0xff]
        %v676 = vld [vmem:[#allocation5 + $0x1e8] sm:$0xff]
        %v677 = vld [vmem:[#allocation5 + $0x1f0] sm:$0xff]
        %v678 = vld [vmem:[#allocation5 + $0x1f8] sm:$0xff]
        %v679 = vld [vmem:[%s4] sm:$0x3]
        %v681 = vlaneseq
        %v682 = vshrl.u32 %v681, 7
        %v683 = vsub.s32 0, %v682
        %v684 = vrot.slane %v679, %v683
        %v685 = vlaneseq
        %v686 = vshrl.u32 %v685, 7
        %v687 = vsub.s32 1, %v686
        %v688 = vrot.slane %v679, %v687
        %v755 = vunpack.c.l.b16 %v615
        %v756 = vunpack.c.h.b16 %v615
        %v757 = vunpack.c.l.b16 %v616
        %v758 = vunpack.c.h.b16 %v616
        %v759 = vunpack.c.l.b16 %v617
        %v760 = vunpack.c.h.b16 %v617
        %v761 = vunpack.c.l.b16 %v618
        %v762 = vunpack.c.h.b16 %v618
        %v763 = vunpack.c.l.b16 %v619
        %v764 = vunpack.c.h.b16 %v619
        %v765 = vunpack.c.l.b16 %v620
        %v766 = vunpack.c.h.b16 %v620
        %v767 = vunpack.c.l.b16 %v621
        %v768 = vunpack.c.h.b16 %v621
        %v769 = vunpack.c.l.b16 %v622
        %v770 = vunpack.c.h.b16 %v622
        %v771 = vunpack.c.l.b16 %v623
        %v772 = vunpack.c.h.b16 %v623
        %v773 = vunpack.c.l.b16 %v624
        %v774 = vunpack.c.h.b16 %v624
        %v775 = vunpack.c.l.b16 %v625
        %v776 = vunpack.c.h.b16 %v625
        %v777 = vunpack.c.l.b16 %v626
        %v778 = vunpack.c.h.b16 %v626
        %v779 = vunpack.c.l.b16 %v627
        %v780 = vunpack.c.h.b16 %v627
        %v781 = vunpack.c.l.b16 %v628
        %v782 = vunpack.c.h.b16 %v628
        %v783 = vunpack.c.l.b16 %v629
        %v784 = vunpack.c.h.b16 %v629
        %v785 = vunpack.c.l.b16 %v630
        %v786 = vunpack.c.h.b16 %v630
        %v787 = vunpack.c.l.b16 %v631
        %v788 = vunpack.c.h.b16 %v631
        %v789 = vunpack.c.l.b16 %v632
        %v790 = vunpack.c.h.b16 %v632
        %v791 = vunpack.c.l.b16 %v633
        %v792 = vunpack.c.h.b16 %v633
        %v793 = vunpack.c.l.b16 %v634
        %v794 = vunpack.c.h.b16 %v634
        %v795 = vunpack.c.l.b16 %v635
        %v796 = vunpack.c.h.b16 %v635
        %v797 = vunpack.c.l.b16 %v636
        %v798 = vunpack.c.h.b16 %v636
        %v799 = vunpack.c.l.b16 %v637
        %v800 = vunpack.c.h.b16 %v637
        %v801 = vunpack.c.l.b16 %v638
        %v802 = vunpack.c.h.b16 %v638
        %v803 = vunpack.c.l.b16 %v639
        %v804 = vunpack.c.h.b16 %v639
        %v805 = vunpack.c.l.b16 %v640
        %v806 = vunpack.c.h.b16 %v640
        %v807 = vunpack.c.l.b16 %v641
        %v808 = vunpack.c.h.b16 %v641
        %v809 = vunpack.c.l.b16 %v642
        %v810 = vunpack.c.h.b16 %v642
        %v811 = vunpack.c.l.b16 %v643
        %v812 = vunpack.c.h.b16 %v643
        %v813 = vunpack.c.l.b16 %v644
        %v814 = vunpack.c.h.b16 %v644
        %v815 = vunpack.c.l.b16 %v645
        %v816 = vunpack.c.h.b16 %v645
        %v817 = vunpack.c.l.b16 %v646
        %v818 = vunpack.c.h.b16 %v646
        %v819 = vunpack.c.l.b16 %v647
        %v820 = vunpack.c.h.b16 %v647
        %v821 = vunpack.c.l.b16 %v648
        %v822 = vunpack.c.h.b16 %v648
        %v823 = vunpack.c.l.b16 %v649
        %v824 = vunpack.c.h.b16 %v649
        %v825 = vunpack.c.l.b16 %v650
        %v826 = vunpack.c.h.b16 %v650
        %v827 = vunpack.c.l.b16 %v651
        %v828 = vunpack.c.h.b16 %v651
        %v829 = vunpack.c.l.b16 %v652
        %v830 = vunpack.c.h.b16 %v652
        %v831 = vunpack.c.l.b16 %v653
        %v832 = vunpack.c.h.b16 %v653
        %v833 = vunpack.c.l.b16 %v654
        %v834 = vunpack.c.h.b16 %v654
        %v835 = vunpack.c.l.b16 %v655
        %v836 = vunpack.c.h.b16 %v655
        %v837 = vunpack.c.l.b16 %v656
        %v838 = vunpack.c.h.b16 %v656
        %v839 = vunpack.c.l.b16 %v657
        %v840 = vunpack.c.h.b16 %v657
        %v841 = vunpack.c.l.b16 %v658
        %v842 = vunpack.c.h.b16 %v658
        %v843 = vunpack.c.l.b16 %v659
        %v844 = vunpack.c.h.b16 %v659
        %v845 = vunpack.c.l.b16 %v660
        %v846 = vunpack.c.h.b16 %v660
        %v847 = vunpack.c.l.b16 %v661
        %v848 = vunpack.c.h.b16 %v661
        %v849 = vunpack.c.l.b16 %v662
        %v850 = vunpack.c.h.b16 %v662
        %v851 = vunpack.c.l.b16 %v663
        %v852 = vunpack.c.h.b16 %v663
        %v853 = vunpack.c.l.b16 %v664
        %v854 = vunpack.c.h.b16 %v664
        %v855 = vunpack.c.l.b16 %v665
        %v856 = vunpack.c.h.b16 %v665
        %v857 = vunpack.c.l.b16 %v666
        %v858 = vunpack.c.h.b16 %v666
        %v859 = vunpack.c.l.b16 %v667
        %v860 = vunpack.c.h.b16 %v667
        %v861 = vunpack.c.l.b16 %v668
        %v862 = vunpack.c.h.b16 %v668
        %v863 = vunpack.c.l.b16 %v669
        %v864 = vunpack.c.h.b16 %v669
        %v865 = vunpack.c.l.b16 %v670
        %v866 = vunpack.c.h.b16 %v670
        %v867 = vunpack.c.l.b16 %v671
        %v868 = vunpack.c.h.b16 %v671
        %v869 = vunpack.c.l.b16 %v672
        %v870 = vunpack.c.h.b16 %v672
        %v871 = vunpack.c.l.b16 %v673
        %v872 = vunpack.c.h.b16 %v673
        %v873 = vunpack.c.l.b16 %v674
        %v874 = vunpack.c.h.b16 %v674
        %v875 = vunpack.c.l.b16 %v675
        %v876 = vunpack.c.h.b16 %v675
        %v877 = vunpack.c.l.b16 %v676
        %v878 = vunpack.c.h.b16 %v676
        %v879 = vunpack.c.l.b16 %v677
        %v880 = vunpack.c.h.b16 %v677
        %v881 = vunpack.c.l.b16 %v678
        %v882 = vunpack.c.h.b16 %v678
        %v883 = vpack.c.b16 %v757, %v755
        %v884 = vpack.c.b16 %v758, %v756
        %v885 = vpack.c.b16 %v761, %v759
        %v886 = vpack.c.b16 %v762, %v760
        %v887 = vpack.c.b16 %v765, %v763
        %v888 = vpack.c.b16 %v766, %v764
        %v889 = vpack.c.b16 %v769, %v767
        %v890 = vpack.c.b16 %v770, %v768
        %v891 = vpack.c.b16 %v773, %v771
        %v892 = vpack.c.b16 %v774, %v772
        %v893 = vpack.c.b16 %v777, %v775
        %v894 = vpack.c.b16 %v778, %v776
        %v895 = vpack.c.b16 %v781, %v779
        %v896 = vpack.c.b16 %v782, %v780
        %v897 = vpack.c.b16 %v785, %v783
        %v898 = vpack.c.b16 %v786, %v784
        %v899 = vpack.c.b16 %v789, %v787
        %v900 = vpack.c.b16 %v790, %v788
        %v901 = vpack.c.b16 %v793, %v791
        %v902 = vpack.c.b16 %v794, %v792
        %v903 = vpack.c.b16 %v797, %v795
        %v904 = vpack.c.b16 %v798, %v796
        %v905 = vpack.c.b16 %v801, %v799
        %v906 = vpack.c.b16 %v802, %v800
        %v907 = vpack.c.b16 %v805, %v803
        %v908 = vpack.c.b16 %v806, %v804
        %v909 = vpack.c.b16 %v809, %v807
        %v910 = vpack.c.b16 %v810, %v808
        %v911 = vpack.c.b16 %v813, %v811
        %v912 = vpack.c.b16 %v814, %v812
        %v913 = vpack.c.b16 %v817, %v815
        %v914 = vpack.c.b16 %v818, %v816
        %v915 = vpack.c.b16 %v821, %v819
        %v916 = vpack.c.b16 %v822, %v820
        %v917 = vpack.c.b16 %v825, %v823
        %v918 = vpack.c.b16 %v826, %v824
        %v919 = vpack.c.b16 %v829, %v827
        %v920 = vpack.c.b16 %v830, %v828
        %v921 = vpack.c.b16 %v833, %v831
        %v922 = vpack.c.b16 %v834, %v832
        %v923 = vpack.c.b16 %v837, %v835
        %v924 = vpack.c.b16 %v838, %v836
        %v925 = vpack.c.b16 %v841, %v839
        %v926 = vpack.c.b16 %v842, %v840
        %v927 = vpack.c.b16 %v845, %v843
        %v928 = vpack.c.b16 %v846, %v844
        %v929 = vpack.c.b16 %v849, %v847
        %v930 = vpack.c.b16 %v850, %v848
        %v931 = vpack.c.b16 %v853, %v851
        %v932 = vpack.c.b16 %v854, %v852
        %v933 = vpack.c.b16 %v857, %v855
        %v934 = vpack.c.b16 %v858, %v856
        %v935 = vpack.c.b16 %v861, %v859
        %v936 = vpack.c.b16 %v862, %v860
        %v937 = vpack.c.b16 %v865, %v863
        %v938 = vpack.c.b16 %v866, %v864
        %v939 = vpack.c.b16 %v869, %v867
        %v940 = vpack.c.b16 %v870, %v868
        %v941 = vpack.c.b16 %v873, %v871
        %v942 = vpack.c.b16 %v874, %v872
        %v943 = vpack.c.b16 %v877, %v875
        %v944 = vpack.c.b16 %v878, %v876
        %v945 = vpack.c.b16 %v881, %v879
        %v946 = vpack.c.b16 %v882, %v880
        %1011 = vmatprep.subr.bf16.mxu0 %v898
        %1012 = vmatpush1.bf16.msra.mxu0 %v897
        %1013 = vmatprep.subr.bf16.mxu0 %v896
        %1014 = vmatpush1.bf16.msra.mxu0 %v895
        %1015 = vmatprep.subr.bf16.mxu0 %v894
        %1016 = vmatpush1.bf16.msra.mxu0 %v893
        %1017 = vmatprep.subr.bf16.mxu0 %v892
        %1018 = vmatpush1.bf16.msra.mxu0 %v891
        %1019 = vmatprep.subr.bf16.mxu0 %v890
        %1020 = vmatpush1.bf16.msra.mxu0 %v889
        %1021 = vmatprep.subr.bf16.mxu0 %v888
        %1022 = vmatpush1.bf16.msra.mxu0 %v887
        %1023 = vmatprep.subr.bf16.mxu0 %v886
        %1024 = vmatpush1.bf16.msra.mxu0 %v885
        %1025 = vmatprep.subr.bf16.mxu0 %v884
        %1026 = vmatpush1.bf16.msra.mxu0 %v883
        %1027 = vmatprep.subr.bf16.mxu0 %v914
        %1028 = vmatpush2.bf16.msra.mxu0 %v913
        %1029 = vmatprep.subr.bf16.mxu0 %v912
        %1030 = vmatpush2.bf16.msra.mxu0 %v911
        %1031 = vmatprep.subr.bf16.mxu0 %v910
        %1032 = vmatpush2.bf16.msra.mxu0 %v909
        %1033 = vmatprep.subr.bf16.mxu0 %v908
        %1034 = vmatpush2.bf16.msra.mxu0 %v907
        %1035 = vmatprep.subr.bf16.mxu0 %v906
        %1036 = vmatpush2.bf16.msra.mxu0 %v905
        %1037 = vmatprep.subr.bf16.mxu0 %v904
        %1038 = vmatpush2.bf16.msra.mxu0 %v903
        %1039 = vmatprep.subr.bf16.mxu0 %v902
        %1040 = vmatpush2.bf16.msra.mxu0 %v901
        %1041 = vmatprep.subr.bf16.mxu0 %v900
        %1042 = vmatpush2.bf16.msra.mxu0 %v899
        %1043 = vmatprep.mubr.bf16.mxu0 %v608
        %1044 = vmatmul.mubr.bf16.gmra.mxu0 %v607
        %v1045 = vpop.f32.mrf.mxu0
        %v1046 = vadd.f32 %v684, %v1045
        %v1047 = vpop.f32.mrf.mxu0
        %v1048 = vadd.f32 %v688, %v1047
        %v1049 = vpop.f32.mrf.mxu0
        %v1050 = vadd.f32 %v684, %v1049
        %v1051 = vpop.f32.mrf.mxu0
        %v1052 = vadd.f32 %v688, %v1051
        %1053 = vmatprep.mubr.bf16.mxu0 %v612
        %1054 = vmatmul.mubr.bf16.gmra.mxu0 %v611
        %v1055 = vpop.f32.mrf.mxu0
        %v1056 = vadd.f32 %v684, %v1055
        %v1057 = vpop.f32.mrf.mxu0
        %v1058 = vadd.f32 %v688, %v1057
        %v1059 = vpop.f32.mrf.mxu0
        %v1060 = vadd.f32 %v684, %v1059
        %v1061 = vpop.f32.mrf.mxu0
        %v1062 = vadd.f32 %v688, %v1061
        %1063 = vdwg.mxu0
        %1064 = vmatprep.subr.bf16.mxu0 %v930
        %1065 = vmatpush1.bf16.msra.mxu0 %v929
        %1066 = vmatprep.subr.bf16.mxu0 %v928
        %1067 = vmatpush1.bf16.msra.mxu0 %v927
        %1068 = vmatprep.subr.bf16.mxu0 %v926
        %1069 = vmatpush1.bf16.msra.mxu0 %v925
        %1070 = vmatprep.subr.bf16.mxu0 %v924
        %1071 = vmatpush1.bf16.msra.mxu0 %v923
        %1072 = vmatprep.subr.bf16.mxu0 %v922
        %1073 = vmatpush1.bf16.msra.mxu0 %v921
        %1074 = vmatprep.subr.bf16.mxu0 %v920
        %1075 = vmatpush1.bf16.msra.mxu0 %v919
        %1076 = vmatprep.subr.bf16.mxu0 %v918
        %1077 = vmatpush1.bf16.msra.mxu0 %v917
        %1078 = vmatprep.subr.bf16.mxu0 %v916
        %1079 = vmatpush1.bf16.msra.mxu0 %v915
        %1080 = vmatprep.subr.bf16.mxu0 %v946
        %1081 = vmatpush2.bf16.msra.mxu0 %v945
        %1082 = vmatprep.subr.bf16.mxu0 %v944
        %1083 = vmatpush2.bf16.msra.mxu0 %v943
        %1084 = vmatprep.subr.bf16.mxu0 %v942
        %1085 = vmatpush2.bf16.msra.mxu0 %v941
        %1086 = vmatprep.subr.bf16.mxu0 %v940
        %1087 = vmatpush2.bf16.msra.mxu0 %v939
        %1088 = vmatprep.subr.bf16.mxu0 %v938
        %1089 = vmatpush2.bf16.msra.mxu0 %v937
        %1090 = vmatprep.subr.bf16.mxu0 %v936
        %1091 = vmatpush2.bf16.msra.mxu0 %v935
        %1092 = vmatprep.subr.bf16.mxu0 %v934
        %1093 = vmatpush2.bf16.msra.mxu0 %v933
        %1094 = vmatprep.subr.bf16.mxu0 %v932
        %1095 = vmatpush2.bf16.msra.mxu0 %v931
        %1096 = vmatprep.mubr.bf16.mxu0 %v610
        %1097 = vmatmul.mubr.bf16.gmra.mxu0 %v609
        %v1098 = vpop.f32.mrf.mxu0
        %v1099 = vadd.f32 %v1046, %v1098
        %v1100 = vpop.f32.mrf.mxu0
        %v1101 = vadd.f32 %v1048, %v1100
        %v1102 = vpop.f32.mrf.mxu0
        %v1103 = vadd.f32 %v1050, %v1102
        %v1104 = vpop.f32.mrf.mxu0
        %v1105 = vadd.f32 %v1052, %v1104
        %1106 = vmatprep.mubr.bf16.mxu0 %v614
        %1107 = vmatmul.mubr.bf16.gmra.mxu0 %v613
        %v1108 = vpop.f32.mrf.mxu0
        %v1109 = vadd.f32 %v1056, %v1108
        %v1110 = vpop.f32.mrf.mxu0
        %v1111 = vadd.f32 %v1058, %v1110
        %v1112 = vpop.f32.mrf.mxu0
        %v1113 = vadd.f32 %v1060, %v1112
        %v1114 = vpop.f32.mrf.mxu0
        %v1115 = vadd.f32 %v1062, %v1114
        %1116 = vdwg.mxu0
        %v1117 = vmax.f32 %v1099, 0.0
        %v1118 = vmax.f32 %v1101, 0.0
        %v1119 = vmax.f32 %v1103, 0.0
        %v1120 = vmax.f32 %v1105, 0.0
        %v1121 = vmax.f32 %v1109, 0.0
        %v1122 = vmax.f32 %v1111, 0.0
        %v1123 = vmax.f32 %v1113, 0.0
        %v1124 = vmax.f32 %v1115, 0.0
        %v1125 = vpack.c.bf16 %v1119, %v1117
        %v1126 = vpack.c.bf16 %v1120, %v1118
        %v1127 = vpack.c.bf16 %v1123, %v1121
        %v1128 = vpack.c.bf16 %v1124, %v1122
        %v1129 = vld [vmem:[#allocation7] sm:$0xf]
        %v1130 = vld [vmem:[#allocation7 + $0x4] sm:$0xf]
        %v1131 = vld [vmem:[#allocation7 + $0x8] sm:$0xf]
        %v1132 = vld [vmem:[#allocation7 + $0xc] sm:$0xf]
        %v1133 = vld [vmem:[#allocation7 + $0x10] sm:$0xf]
        %v1134 = vld [vmem:[#allocation7 + $0x14] sm:$0xf]
        %v1135 = vld [vmem:[#allocation7 + $0x18] sm:$0xf]
        %v1136 = vld [vmem:[#allocation7 + $0x1c] sm:$0xf]
        %v1137 = vld [vmem:[#allocation7 + $0x20] sm:$0xf]
        %v1138 = vld [vmem:[#allocation7 + $0x24] sm:$0xf]
        %v1139 = vld [vmem:[#allocation7 + $0x28] sm:$0xf]
        %v1140 = vld [vmem:[#allocation7 + $0x2c] sm:$0xf]
        %v1141 = vld [vmem:[#allocation7 + $0x30] sm:$0xf]
        %v1142 = vld [vmem:[#allocation7 + $0x34] sm:$0xf]
        %v1143 = vld [vmem:[#allocation7 + $0x38] sm:$0xf]
        %v1144 = vld [vmem:[#allocation7 + $0x3c] sm:$0xf]
        %v1145 = vld [vmem:[#allocation7 + $0x40] sm:$0xf]
        %v1146 = vld [vmem:[#allocation7 + $0x44] sm:$0xf]
        %v1147 = vld [vmem:[#allocation7 + $0x48] sm:$0xf]
        %v1148 = vld [vmem:[#allocation7 + $0x4c] sm:$0xf]
        %v1149 = vld [vmem:[#allocation7 + $0x50] sm:$0xf]
        %v1150 = vld [vmem:[#allocation7 + $0x54] sm:$0xf]
        %v1151 = vld [vmem:[#allocation7 + $0x58] sm:$0xf]
        %v1152 = vld [vmem:[#allocation7 + $0x5c] sm:$0xf]
        %v1153 = vld [vmem:[#allocation7 + $0x60] sm:$0xf]
        %v1154 = vld [vmem:[#allocation7 + $0x64] sm:$0xf]
        %v1155 = vld [vmem:[#allocation7 + $0x68] sm:$0xf]
        %v1156 = vld [vmem:[#allocation7 + $0x6c] sm:$0xf]
        %v1157 = vld [vmem:[#allocation7 + $0x70] sm:$0xf]
        %v1158 = vld [vmem:[#allocation7 + $0x74] sm:$0xf]
        %v1159 = vld [vmem:[#allocation7 + $0x78] sm:$0xf]
        %v1160 = vld [vmem:[#allocation7 + $0x7c] sm:$0xf]
        %v1161 = vld [vmem:[%s6] sm:$0x1]
        %v1163 = vlaneseq
        %v1164 = vshrl.u32 %v1163, 7
        %v1165 = vsub.s32 0, %v1164
        %v1166 = vrot.slane %v1161, %v1165
        %v1200 = vunpack.c.l.b16 %v1129
        %v1201 = vunpack.c.l.b16 %v1130
        %v1202 = vunpack.c.l.b16 %v1131
        %v1203 = vunpack.c.l.b16 %v1132
        %v1204 = vunpack.c.l.b16 %v1133
        %v1205 = vunpack.c.l.b16 %v1134
        %v1206 = vunpack.c.l.b16 %v1135
        %v1207 = vunpack.c.l.b16 %v1136
        %v1208 = vunpack.c.l.b16 %v1137
        %v1209 = vunpack.c.l.b16 %v1138
        %v1210 = vunpack.c.l.b16 %v1139
        %v1211 = vunpack.c.l.b16 %v1140
        %v1212 = vunpack.c.l.b16 %v1141
        %v1213 = vunpack.c.l.b16 %v1142
        %v1214 = vunpack.c.l.b16 %v1143
        %v1215 = vunpack.c.l.b16 %v1144
        %v1216 = vunpack.c.l.b16 %v1145
        %v1217 = vunpack.c.l.b16 %v1146
        %v1218 = vunpack.c.l.b16 %v1147
        %v1219 = vunpack.c.l.b16 %v1148
        %v1220 = vunpack.c.l.b16 %v1149
        %v1221 = vunpack.c.l.b16 %v1150
        %v1222 = vunpack.c.l.b16 %v1151
        %v1223 = vunpack.c.l.b16 %v1152
        %v1224 = vunpack.c.l.b16 %v1153
        %v1225 = vunpack.c.l.b16 %v1154
        %v1226 = vunpack.c.l.b16 %v1155
        %v1227 = vunpack.c.l.b16 %v1156
        %v1228 = vunpack.c.l.b16 %v1157
        %v1229 = vunpack.c.l.b16 %v1158
        %v1230 = vunpack.c.l.b16 %v1159
        %v1231 = vunpack.c.l.b16 %v1160
        %v1232 = vpack.c.b16 %v1201, %v1200
        %v1233 = vpack.c.b16 %v1203, %v1202
        %v1234 = vpack.c.b16 %v1205, %v1204
        %v1235 = vpack.c.b16 %v1207, %v1206
        %v1236 = vpack.c.b16 %v1209, %v1208
        %v1237 = vpack.c.b16 %v1211, %v1210
        %v1238 = vpack.c.b16 %v1213, %v1212
        %v1239 = vpack.c.b16 %v1215, %v1214
        %v1240 = vpack.c.b16 %v1217, %v1216
        %v1241 = vpack.c.b16 %v1219, %v1218
        %v1242 = vpack.c.b16 %v1221, %v1220
        %v1243 = vpack.c.b16 %v1223, %v1222
        %v1244 = vpack.c.b16 %v1225, %v1224
        %v1245 = vpack.c.b16 %v1227, %v1226
        %v1246 = vpack.c.b16 %v1229, %v1228
        %v1247 = vpack.c.b16 %v1231, %v1230
        %1264 = vmatprep.subr.bf16.mxu0 0
        %1265 = vmatpush1.bf16.msra.mxu0 %v1239
        %1266 = vmatprep.subr.bf16.mxu0 0
        %1267 = vmatpush1.bf16.msra.mxu0 %v1238
        %1268 = vmatprep.subr.bf16.mxu0 0
        %1269 = vmatpush1.bf16.msra.mxu0 %v1237
        %1270 = vmatprep.subr.bf16.mxu0 0
        %1271 = vmatpush1.bf16.msra.mxu0 %v1236
        %1272 = vmatprep.subr.bf16.mxu0 0
        %1273 = vmatpush1.bf16.msra.mxu0 %v1235
        %1274 = vmatprep.subr.bf16.mxu0 0
        %1275 = vmatpush1.bf16.msra.mxu0 %v1234
        %1276 = vmatprep.subr.bf16.mxu0 0
        %1277 = vmatpush1.bf16.msra.mxu0 %v1233
        %1278 = vmatprep.subr.bf16.mxu0 0
        %1279 = vmatpush1.bf16.msra.mxu0 %v1232
        %1280 = vmatprep.subr.bf16.mxu0 0
        %1281 = vmatpush2.bf16.msra.mxu0 %v1247
        %1282 = vmatprep.subr.bf16.mxu0 0
        %1283 = vmatpush2.bf16.msra.mxu0 %v1246
        %1284 = vmatprep.subr.bf16.mxu0 0
        %1285 = vmatpush2.bf16.msra.mxu0 %v1245
        %1286 = vmatprep.subr.bf16.mxu0 0
        %1287 = vmatpush2.bf16.msra.mxu0 %v1244
        %1288 = vmatprep.subr.bf16.mxu0 0
        %1289 = vmatpush2.bf16.msra.mxu0 %v1243
        %1290 = vmatprep.subr.bf16.mxu0 0
        %1291 = vmatpush2.bf16.msra.mxu0 %v1242
        %1292 = vmatprep.subr.bf16.mxu0 0
        %1293 = vmatpush2.bf16.msra.mxu0 %v1241
        %1294 = vmatprep.subr.bf16.mxu0 0
        %1295 = vmatpush2.bf16.msra.mxu0 %v1240
        %1296 = vmatprep.mubr.bf16.mxu0 %v1126
        %1297 = vmatmul.mubr.bf16.gmra.mxu0 %v1125
        %v1298 = vpop.f32.mrf.mxu0
        %v1299 = vadd.f32 %v1166, %v1298
        %v1300 = vpop.f32.mrf.mxu0
        %v1301 = vpop.f32.mrf.mxu0
        %v1302 = vadd.f32 %v1166, %v1301
        %v1303 = vpop.f32.mrf.mxu0
        %1304 = vmatprep.mubr.bf16.mxu0 %v1128
        %1305 = vmatmul.mubr.bf16.gmra.mxu0 %v1127
        %v1306 = vpop.f32.mrf.mxu0
        %v1307 = vadd.f32 %v1166, %v1306
        %v1308 = vpop.f32.mrf.mxu0
        %v1309 = vpop.f32.mrf.mxu0
        %v1310 = vadd.f32 %v1166, %v1309
        %v1311 = vpop.f32.mrf.mxu0
        %1312 = vdwg.mxu0
        %v1313 = vmax.f32 %v1299, 0.0
        %v1314 = vmax.f32 %v1302, 0.0
        %v1315 = vmax.f32 %v1307, 0.0
        %v1316 = vmax.f32 %v1310, 0.0
        %v1317 = vpack.c.bf16 %v1314, %v1313
        %v1318 = vpack.c.bf16 %v1316, %v1315
        %v1319 = vld [vmem:[#allocation8] sm:$0xf]
        %v1320 = vld [vmem:[#allocation8 + $0x4] sm:$0xf]
        %v1321 = vld [vmem:[#allocation8 + $0x8] sm:$0xf]
        %v1322 = vld [vmem:[#allocation8 + $0xc] sm:$0xf]
        %v1323 = vld [vmem:[#allocation8 + $0x10] sm:$0xf]
        %v1324 = vld [vmem:[#allocation8 + $0x14] sm:$0xf]
        %v1325 = vld [vmem:[#allocation8 + $0x18] sm:$0xf]
        %v1326 = vld [vmem:[#allocation8 + $0x1c] sm:$0xf]
        %v1327 = vld [vmem:[#allocation8 + $0x20] sm:$0xf]
        %v1328 = vld [vmem:[#allocation8 + $0x24] sm:$0xf]
        %v1329 = vld [vmem:[#allocation8 + $0x28] sm:$0xf]
        %v1330 = vld [vmem:[#allocation8 + $0x2c] sm:$0xf]
        %v1331 = vld [vmem:[#allocation8 + $0x30] sm:$0xf]
        %v1332 = vld [vmem:[#allocation8 + $0x34] sm:$0xf]
        %v1333 = vld [vmem:[#allocation8 + $0x38] sm:$0xf]
        %v1334 = vld [vmem:[#allocation8 + $0x3c] sm:$0xf]
        %v1335 = vld [vmem:[%s8] sm:$0x1]
        %v1337 = vlaneseq
        %v1338 = vshrl.u32 %v1337, 7
        %v1339 = vsub.s32 0, %v1338
        %v1340 = vrot.slane %v1335, %v1339
        %v1358 = vunpack.c.l.b16 %v1319
        %v1359 = vunpack.c.l.b16 %v1320
        %v1360 = vunpack.c.l.b16 %v1321
        %v1361 = vunpack.c.l.b16 %v1322
        %v1362 = vunpack.c.l.b16 %v1323
        %v1363 = vunpack.c.l.b16 %v1324
        %v1364 = vunpack.c.l.b16 %v1325
        %v1365 = vunpack.c.l.b16 %v1326
        %v1366 = vunpack.c.l.b16 %v1327
        %v1367 = vunpack.c.l.b16 %v1328
        %v1368 = vunpack.c.l.b16 %v1329
        %v1369 = vunpack.c.l.b16 %v1330
        %v1370 = vunpack.c.l.b16 %v1331
        %v1371 = vunpack.c.l.b16 %v1332
        %v1372 = vunpack.c.l.b16 %v1333
        %v1373 = vunpack.c.l.b16 %v1334
        %v1374 = vpack.c.b16 %v1359, %v1358
        %v1375 = vpack.c.b16 %v1361, %v1360
        %v1376 = vpack.c.b16 %v1363, %v1362
        %v1377 = vpack.c.b16 %v1365, %v1364
        %v1378 = vpack.c.b16 %v1367, %v1366
        %v1379 = vpack.c.b16 %v1369, %v1368
        %v1380 = vpack.c.b16 %v1371, %v1370
        %v1381 = vpack.c.b16 %v1373, %v1372
        %1390 = vmatprep.subr.bf16.mxu0 0
        %1391 = vmatpush1.bf16.msra.mxu0 %v1381
        %1392 = vmatprep.subr.bf16.mxu0 0
        %1393 = vmatpush1.bf16.msra.mxu0 %v1380
        %1394 = vmatprep.subr.bf16.mxu0 0
        %1395 = vmatpush1.bf16.msra.mxu0 %v1379
        %1396 = vmatprep.subr.bf16.mxu0 0
        %1397 = vmatpush1.bf16.msra.mxu0 %v1378
        %1398 = vmatprep.subr.bf16.mxu0 0
        %1399 = vmatpush1.bf16.msra.mxu0 %v1377
        %1400 = vmatprep.subr.bf16.mxu0 0
        %1401 = vmatpush1.bf16.msra.mxu0 %v1376
        %1402 = vmatprep.subr.bf16.mxu0 0
        %1403 = vmatpush1.bf16.msra.mxu0 %v1375
        %1404 = vmatprep.subr.bf16.mxu0 0
        %1405 = vmatpush1.bf16.msra.mxu0 %v1374
        %1406 = vmatprep.subr.bf16.mxu0 0
        %1407 = vmatpush2.bf16.msra.mxu0 0
        %1408 = vmatprep.subr.bf16.mxu0 0
        %1409 = vmatpush2.bf16.msra.mxu0 0
        %1410 = vmatprep.subr.bf16.mxu0 0
        %1411 = vmatpush2.bf16.msra.mxu0 0
        %1412 = vmatprep.subr.bf16.mxu0 0
        %1413 = vmatpush2.bf16.msra.mxu0 0
        %1414 = vmatprep.subr.bf16.mxu0 0
        %1415 = vmatpush2.bf16.msra.mxu0 0
        %1416 = vmatprep.subr.bf16.mxu0 0
        %1417 = vmatpush2.bf16.msra.mxu0 0
        %1418 = vmatprep.subr.bf16.mxu0 0
        %1419 = vmatpush2.bf16.msra.mxu0 0
        %1420 = vmatprep.subr.bf16.mxu0 0
        %1421 = vmatpush2.bf16.msra.mxu0 0
        %1422 = vmatprep.mubr.bf16.mxu0 0
        %1423 = vmatmul.mubr.bf16.gmra.mxu0 %v1317
        %v1424 = vpop.f32.mrf.mxu0
        %v1425 = vadd.f32 %v1340, %v1424
        %v1426 = vpop.f32.mrf.mxu0
        %v1427 = vpop.f32.mrf.mxu0
        %v1428 = vadd.f32 %v1340, %v1427
        %v1429 = vpop.f32.mrf.mxu0
        %1430 = vmatprep.mubr.bf16.mxu0 0
        %1431 = vmatmul.mubr.bf16.gmra.mxu0 %v1318
        %v1432 = vpop.f32.mrf.mxu0
        %v1433 = vadd.f32 %v1340, %v1432
        %v1434 = vpop.f32.mrf.mxu0
        %v1435 = vpop.f32.mrf.mxu0
        %v1436 = vadd.f32 %v1340, %v1435
        %v1437 = vpop.f32.mrf.mxu0
        %1438 = vdwg.mxu0
        %1439 = vst [vmem:[%s385] sm:$0xff] %v1425
        %1440 = vst [vmem:[%s385 + $0x8] sm:$0xff] %v1428
        %1441 = vst [vmem:[%s385 + $0x10] sm:$0xff] %v1433
        %1442 = vst [vmem:[%s385 + $0x18] sm:$0xff] %v1436
        %s1443 = sand.u32 %s228, 1
        %s1444 = scalar_lea.sflag [#allocation4], %s1443
        %s1445 = sand.u32 %s228, 1
        %s1446 = smul.addr %s1445, 32
        %s1447 = scalar_lea.vmem [#allocation10], %s1446
        // Predicated region
        $region73: #{tpu_custom_call.1} parent=55 // pred_check
          %p1448 = pneg %p238
        $region74: #{tpu_custom_call.1} parent=55 // pred_check_branch
          %1450 = sbr.rel (%p1448) target = $region76
        $region75: #{tpu_custom_call.1} parent=55 // pred_region
          %s1451 = smul.u32 4, %s26
          %s1453 = ssub.s32 512, 512
          %1454 = vsyncadd %s1444, %s1453
          %s1455 = smul.addr %s1451, 128
          %s1456 = scalar_lea.hbm %s9, %s1455
          %s1457 = sshll.u32 %s1447, 4
          %s1458 = int_to_ptr.vmem [resolvable:$true] %s1457
          %1463 = dma.vmem_to_hbm [thread:$0]  %s1458, 512, %s1456, %s1444, 128, 128, 8
        $region76: #{tpu_custom_call.1} parent=55 // pred_fallthru
          _
      $region56: #{tpu_custom_call.1} parent=5 // pred_fallthru
        _
      %p1464 = scmp.le.s32.totalorder 2, %s21
      // Predicated region
      $region77: #{tpu_custom_call.1} parent=5 // pred_check
        %p1465 = pneg %p1464
      $region78: #{tpu_custom_call.1} parent=5 // pred_check_branch
        %1467 = sbr.rel (%p1465) target = $region80
      $region79: #{tpu_custom_call.1} parent=5 // pred_region
        %s1468 = ssub.s32 %s21, 2
        // Predicated region
        $region81: #{tpu_custom_call.1} parent=79 // pred_check
          %p1469 = pneg %p244
        $region82: #{tpu_custom_call.1} parent=79 // pred_check_branch
          %1471 = sbr.rel (%p1469) target = $region84
        $region83: #{tpu_custom_call.1} parent=79 // pred_region
          %s1472 = sand.u32 %s229, 1
          %s1473 = scalar_lea.sflag [#allocation4], %s1472
          %s1474 = sand.u32 %s229, 1
          %s1475 = smul.addr %s1474, 32
          %s1476 = scalar_lea.vmem [#allocation10], %s1475
          %1477 = dma.done %s1473, 512
        $region84: #{tpu_custom_call.1} parent=79 // pred_fallthru
          _
      $region80: #{tpu_custom_call.1} parent=5 // pred_fallthru
        _
    $region6: #{tpu_custom_call.1} parent=1 // loop_footer
      %s25 = sadd.s32 1, %s21
    $region7: #{tpu_custom_call.1} parent=1 // loop_footer_branch
      %20 = sbr.rel target = $region3
    $region8: #{tpu_custom_call.1} parent=1 // loop_exit
      _
    %1478 = vsyncpa [#allocation3], 1
    %s1479 = scalar_lea.sflag [#allocation3], 1
    %1480 = vsyncpa %s1479, 1
    %1481 = vsyncpa [#allocation6], 1
    %1482 = vsyncpa [#allocation9], 1
    %1483 = vsyncpa [#allocation4], 1
    %s1484 = scalar_lea.sflag [#allocation4], 1
    %1485 = vsyncpa %s1484, 1

</llo_original>
